<compile_context>
chip_gen: v6e
topology: v6e:2x2x1
jax: 0.10.0
libtpu: 0.0.40
codegen_flags: <defaults>
</compile_context>

<pallas_src>
import functools
import math

import jax
import jax.numpy as jnp
from jax.experimental import pallas as pl
from jax.experimental.pallas import tpu as pltpu


def _softplus(x):
    # Numerically stable softplus with a single exp + log1p per element
    # (instead of evaluating both branches of a jnp.where) -- relieves the
    # single EUP slot.
    return jnp.maximum(x, 0.0) + jnp.log1p(jnp.exp(-jnp.abs(x)))


def dca_zinb_kernel(n_input,
                    x_ref, sf_ref,
                    w_e1, b_e1, w_e2, b_e2, w_e3, b_e3, w_z, b_z,
                    w_d1, b_d1, w_d2, b_d2, w_d3, b_d3,
                    w_head, b_head,
                    enc1_o, enc2_o, enc3_o, z_o, mean_o, disp_o, pi_o):
    x = x_ref[...]

    def lin(h, w_ref, b_ref):
        w = w_ref[...]
        # matmul in the weights' dtype (bf16) with f32 accumulation on the MXU
        acc = jnp.dot(h.astype(w.dtype), w, preferred_element_type=jnp.float32)
        return acc + b_ref[...].astype(jnp.float32)

    # ---- encoder ----
    h1 = jnp.maximum(lin(x, w_e1, b_e1), 0.0)
    h2 = jnp.maximum(lin(h1, w_e2, b_e2), 0.0)
    h3 = jnp.maximum(lin(h2, w_e3, b_e3), 0.0)
    z = lin(h3, w_z, b_z)

    # ---- decoder ----
    d1 = jnp.maximum(lin(z, w_d1, b_d1), 0.0)
    d2 = jnp.maximum(lin(d1, w_d2, b_d2), 0.0)
    d3 = jnp.maximum(lin(d2, w_d3, b_d3), 0.0)

    # ---- fused ZINB heads: one matmul against the shared LHS, then slices ----
    head = lin(d3, w_head, b_head)
    pi_lin = head[:, 0 * n_input:1 * n_input]
    disp_lin = head[:, 1 * n_input:2 * n_input]
    mean_lin = head[:, 2 * n_input:3 * n_input]

    pi = jax.nn.sigmoid(pi_lin)                           # pi_act
    disp = jnp.clip(_softplus(disp_lin), 1e-4, 1e4)       # disp_act
    mean = jnp.clip(jnp.exp(mean_lin), 1e-5, 1e6)         # mean_act
    mean = mean * sf_ref[...]   # == (mean.T * scale_factor).T (per-row scale)

    enc1_o[...] = h1
    enc2_o[...] = h2
    enc3_o[...] = h3
    z_o[...] = z
    mean_o[...] = mean
    disp_o[...] = disp
    pi_o[...] = pi


def _pinned_spec(shape):
    """Whole-array, batch-invariant (weight) block: fetched once, kept in VMEM."""
    return pl.BlockSpec(shape, lambda i: (0,) * len(shape))


def _pick_batch_tile(batch):
    # 256 rows fills the 256-wide MXU on v6e/v7x, is a multiple of 128 (fine for
    # v5e's 128x128 MXU) and of the (8,128) tiling rule.  Small batches use the
    # full batch as a single tile (block == full array dim is always legal).
    return 256 if batch > 256 else batch


def make_params(key, dims):
    """dims = [(n_in, n_out), ...]; PyTorch-Linear-style uniform init."""
    params = []
    for (fan_in, fan_out) in dims:
        key, kw, kb = jax.random.split(key, 3)
        lim = 1.0 / math.sqrt(fan_in)
        w = jax.random.uniform(kw, (fan_in, fan_out), jnp.float32, -lim, lim)
        b = jax.random.uniform(kb, (1, fan_out), jnp.float32, -lim, lim)
        params += [w, b]
    return params


def dca_zinb_forward(x, scale_factor, params, *, matmul_dtype=jnp.bfloat16):
    B, n_input = x.shape
    x = x.astype(jnp.float32)
    sf = scale_factor.reshape(B, 1).astype(jnp.float32)

    (w_e1, b_e1, w_e2, b_e2, w_e3, b_e3, w_z, b_z,
     w_d1, b_d1, w_d2, b_d2, w_d3, b_d3,
     w_pi, b_pi, w_disp, b_disp, w_mean, b_mean) = params

    # Fuse the three ZINB heads (same LHS) into one lane-dense matmul.
    w_head = jnp.concatenate([w_pi, w_disp, w_mean], axis=1)
    b_head = jnp.concatenate([b_pi, b_disp, b_mean], axis=1)

    weights = [w_e1, w_e2, w_e3, w_z, w_d1, w_d2, w_d3, w_head]
    biases = [b_e1, b_e2, b_e3, b_z, b_d1, b_d2, b_d3, b_head]
    # bf16 weights: MXU-native everywhere, halves weight DMA / VMEM footprint.
    weights = [w.astype(matmul_dtype) for w in weights]
    biases = [b.astype(jnp.float32) for b in biases]

    n_enc_1, n_enc_2, n_enc_3, n_z = (w_e1.shape[1], w_e2.shape[1],
                                      w_e3.shape[1], w_z.shape[1])

    tb = _pick_batch_tile(B)
    grid = (pl.cdiv(B, tb),)

    out_feats = (n_enc_1, n_enc_2, n_enc_3, n_z, n_input, n_input, n_input)
    out_shape = tuple(jax.ShapeDtypeStruct((B, f), jnp.float32) for f in out_feats)

    # Batch-tiled specs for x / sf / outputs; batch-invariant (pinned) weights.
    def row_spec(f):
        return pl.BlockSpec((tb, f), lambda i: (i, 0))

    in_specs = [row_spec(n_input), row_spec(1)]
    for w, b in zip(weights, biases):
        in_specs.append(_pinned_spec(w.shape))
        in_specs.append(_pinned_spec(b.shape))
    out_specs = tuple(row_spec(f) for f in out_feats)

    # Advisory cost model for XLA's scheduler around the custom call.
    weight_bytes = (sum(w.size * w.dtype.itemsize for w in weights)
                    + sum(b.size * 4 for b in biases))
    flops = 2 * B * sum(w.shape[0] * w.shape[1] for w in weights)
    transcendentals = 4 * B * n_input        # sigmoid + softplus (exp+log) + exp
    bytes_accessed = (x.size * 4 + sf.size * 4 + weight_bytes
                      + sum(B * f * 4 for f in out_feats))

    # VMEM budget: double-buffered weights + double-buffered row tiles
    # + intermediate activations + headroom.  Clamped well below the v7x 64 MiB
    # physical VMEM for realistic DCA layer sizes.
    tile_bytes = 2 * (tb * n_input * 4 + tb * 4 + sum(tb * f * 4 for f in out_feats))
    act_bytes = tb * (n_enc_1 + n_enc_2 + n_enc_3 + n_z + 3 * n_input) * 4
    vmem_limit = int(min(max(2 * weight_bytes + tile_bytes + act_bytes + (8 << 20),
                             16 << 20),
                         56 << 20))

    kernel = functools.partial(dca_zinb_kernel, n_input)
    fn = pl.pallas_call(
        kernel,
        out_shape=out_shape,
        grid=grid,
        in_specs=in_specs,
        out_specs=out_specs,
        compiler_params=pltpu.CompilerParams(
            dimension_semantics=("parallel",),   # shard batch tiles across TCs
            vmem_limit_bytes=vmem_limit),
        cost_estimate=pl.CostEstimate(
            flops=int(flops),
            transcendentals=int(transcendentals),
            bytes_accessed=int(bytes_accessed)),
    )
    args = [a for wb in zip(weights, biases) for a in wb]
    return fn(x, sf, *args)


if __name__ == "__main__":
    # Small, deterministic example consistent with the module.
    B = 8
    n_input, n_z = 32, 8
    n_enc_1, n_enc_2, n_enc_3 = 64, 32, 16
    n_dec_1, n_dec_2, n_dec_3 = 16, 32, 64

    layer_dims = [
        (n_input, n_enc_1), (n_enc_1, n_enc_2), (n_enc_2, n_enc_3),
        (n_enc_3, n_z),
        (n_z, n_dec_1), (n_dec_1, n_dec_2), (n_dec_2, n_dec_3),
        (n_dec_3, n_input),   # pi
        (n_dec_3, n_input),   # disp
        (n_dec_3, n_input),   # mean
    ]

    key = jax.random.PRNGKey(0)
    key, kx, ks, kp = jax.random.split(key, 4)
    x = jax.random.normal(kx, (B, n_input), jnp.float32)
    scale_factor = jax.random.uniform(ks, (B,), jnp.float32, 0.5, 1.5)
    params = make_params(kp, layer_dims)

    outs = dca_zinb_forward(x, scale_factor, params)
    outs = jax.block_until_ready(outs)

    enc_h1, enc_h2, enc_h3, z, mean, disp, pi = outs
    assert enc_h1.shape == (B, n_enc_1)
    assert enc_h2.shape == (B, n_enc_2)
    assert enc_h3.shape == (B, n_enc_3)
    assert z.shape == (B, n_z)
    assert mean.shape == (B, n_input)
    assert disp.shape == (B, n_input)
    assert pi.shape == (B, n_input)
    assert bool(jnp.all(jnp.isfinite(mean)))
    assert bool(jnp.all(jnp.isfinite(disp)))
    assert bool(jnp.all(jnp.isfinite(pi)))
    assert bool(jnp.all(pi >= 0.0)) and bool(jnp.all(pi <= 1.0))
    assert bool(jnp.all(disp >= 1e-4)) and bool(jnp.all(disp <= 1e4))

    print("KERNEL_OK")
</pallas_src>

<mosaic_0001>
module attributes {stable_mosaic.version = 11 : i64} {
  func.func @dca_zinb_kernel(%arg0: i32, %arg1: memref<8x32xf32, #tpu.memory_space<vmem>>, %arg2: memref<8x1xf32, #tpu.memory_space<vmem>>, %arg3: memref<32x64xbf16, #tpu.memory_space<vmem>>, %arg4: memref<1x64xf32, #tpu.memory_space<vmem>>, %arg5: memref<64x32xbf16, #tpu.memory_space<vmem>>, %arg6: memref<1x32xf32, #tpu.memory_space<vmem>>, %arg7: memref<32x16xbf16, #tpu.memory_space<vmem>>, %arg8: memref<1x16xf32, #tpu.memory_space<vmem>>, %arg9: memref<16x8xbf16, #tpu.memory_space<vmem>>, %arg10: memref<1x8xf32, #tpu.memory_space<vmem>>, %arg11: memref<8x16xbf16, #tpu.memory_space<vmem>>, %arg12: memref<1x16xf32, #tpu.memory_space<vmem>>, %arg13: memref<16x32xbf16, #tpu.memory_space<vmem>>, %arg14: memref<1x32xf32, #tpu.memory_space<vmem>>, %arg15: memref<32x64xbf16, #tpu.memory_space<vmem>>, %arg16: memref<1x64xf32, #tpu.memory_space<vmem>>, %arg17: memref<64x96xbf16, #tpu.memory_space<vmem>>, %arg18: memref<1x96xf32, #tpu.memory_space<vmem>>, %arg19: memref<8x64xf32, #tpu.memory_space<vmem>>, %arg20: memref<8x32xf32, #tpu.memory_space<vmem>>, %arg21: memref<8x16xf32, #tpu.memory_space<vmem>>, %arg22: memref<8x8xf32, #tpu.memory_space<vmem>>, %arg23: memref<8x32xf32, #tpu.memory_space<vmem>>, %arg24: memref<8x32xf32, #tpu.memory_space<vmem>>, %arg25: memref<8x32xf32, #tpu.memory_space<vmem>>) attributes {dimension_semantics = [#tpu.dimension_semantics<parallel>], iteration_bounds = array<i64: 1>, scalar_prefetch = 0 : i64, scratch_operands = 0 : i64, tpu.core_type = #tpu.core_type<tc>, window_params = [{transform_indices = @transform_0, window_bounds = array<i64: 8, 32>}, {transform_indices = @transform_1, window_bounds = array<i64: 8, 1>}, {pipeline_mode = #tpu.pipeline_mode<synchronous>, transform_indices = @transform_2, window_bounds = array<i64: 32, 64>}, {pipeline_mode = #tpu.pipeline_mode<synchronous>, transform_indices = @transform_3, window_bounds = array<i64: 1, 64>}, {pipeline_mode = #tpu.pipeline_mode<synchronous>, transform_indices = @transform_4, window_bounds = array<i64: 64, 32>}, {pipeline_mode = #tpu.pipeline_mode<synchronous>, transform_indices = @transform_5, window_bounds = array<i64: 1, 32>}, {pipeline_mode = #tpu.pipeline_mode<synchronous>, transform_indices = @transform_6, window_bounds = array<i64: 32, 16>}, {pipeline_mode = #tpu.pipeline_mode<synchronous>, transform_indices = @transform_7, window_bounds = array<i64: 1, 16>}, {pipeline_mode = #tpu.pipeline_mode<synchronous>, transform_indices = @transform_8, window_bounds = array<i64: 16, 8>}, {pipeline_mode = #tpu.pipeline_mode<synchronous>, transform_indices = @transform_9, window_bounds = array<i64: 1, 8>}, {pipeline_mode = #tpu.pipeline_mode<synchronous>, transform_indices = @transform_10, window_bounds = array<i64: 8, 16>}, {pipeline_mode = #tpu.pipeline_mode<synchronous>, transform_indices = @transform_11, window_bounds = array<i64: 1, 16>}, {pipeline_mode = #tpu.pipeline_mode<synchronous>, transform_indices = @transform_12, window_bounds = array<i64: 16, 32>}, {pipeline_mode = #tpu.pipeline_mode<synchronous>, transform_indices = @transform_13, window_bounds = array<i64: 1, 32>}, {pipeline_mode = #tpu.pipeline_mode<synchronous>, transform_indices = @transform_14, window_bounds = array<i64: 32, 64>}, {pipeline_mode = #tpu.pipeline_mode<synchronous>, transform_indices = @transform_15, window_bounds = array<i64: 1, 64>}, {pipeline_mode = #tpu.pipeline_mode<synchronous>, transform_indices = @transform_16, window_bounds = array<i64: 64, 96>}, {pipeline_mode = #tpu.pipeline_mode<synchronous>, transform_indices = @transform_17, window_bounds = array<i64: 1, 96>}, {transform_indices = @transform_18, window_bounds = array<i64: 8, 64>}, {transform_indices = @transform_19, window_bounds = array<i64: 8, 32>}, {transform_indices = @transform_20, window_bounds = array<i64: 8, 16>}, {transform_indices = @transform_21, window_bounds = array<i64: 8, 8>}, {transform_indices = @transform_22, window_bounds = array<i64: 8, 32>}, {transform_indices = @transform_23, window_bounds = array<i64: 8, 32>}, {transform_indices = @transform_24, window_bounds = array<i64: 8, 32>}]} {
    %c0 = arith.constant 0 : index
    %c0_0 = arith.constant 0 : index
    %0 = vector.load %arg1[%c0, %c0_0] : memref<8x32xf32, #tpu.memory_space<vmem>>, vector<8x32xf32>
    %c0_1 = arith.constant 0 : index
    %c0_2 = arith.constant 0 : index
    %1 = vector.load %arg3[%c0_1, %c0_2] : memref<32x64xbf16, #tpu.memory_space<vmem>>, vector<32x64xbf16>
    %2 = arith.truncf %0 : vector<8x32xf32> to vector<8x32xbf16>
    %cst = arith.constant dense<0.000000e+00> : vector<8x64xf32>
    %3 = tpu.matmul %2, %1, %cst {dimension_numbers = #tpu.dot_dimension_numbers<[1], [0], [0], [1], [0, 0, 1, 1], [], []>} : vector<8x32xbf16>, vector<32x64xbf16>, vector<8x64xf32> -> vector<8x64xf32>
    %c0_3 = arith.constant 0 : index
    %c0_4 = arith.constant 0 : index
    %4 = vector.load %arg4[%c0_3, %c0_4] : memref<1x64xf32, #tpu.memory_space<vmem>>, vector<1x64xf32>
    %5 = vector.broadcast %4 : vector<1x64xf32> to vector<8x64xf32>
    %6 = arith.addf %3, %5 : vector<8x64xf32>
    %cst_5 = arith.constant 0.000000e+00 : f32
    %7 = vector.broadcast %cst_5 : f32 to vector<8x64xf32>
    %8 = arith.maximumf %6, %7 : vector<8x64xf32>
    %c0_6 = arith.constant 0 : index
    %c0_7 = arith.constant 0 : index
    %9 = vector.load %arg5[%c0_6, %c0_7] : memref<64x32xbf16, #tpu.memory_space<vmem>>, vector<64x32xbf16>
    %10 = arith.truncf %8 : vector<8x64xf32> to vector<8x64xbf16>
    %cst_8 = arith.constant dense<0.000000e+00> : vector<8x32xf32>
    %11 = tpu.matmul %10, %9, %cst_8 {dimension_numbers = #tpu.dot_dimension_numbers<[1], [0], [0], [1], [0, 0, 1, 1], [], []>} : vector<8x64xbf16>, vector<64x32xbf16>, vector<8x32xf32> -> vector<8x32xf32>
    %c0_9 = arith.constant 0 : index
    %c0_10 = arith.constant 0 : index
    %12 = vector.load %arg6[%c0_9, %c0_10] : memref<1x32xf32, #tpu.memory_space<vmem>>, vector<1x32xf32>
    %13 = vector.broadcast %12 : vector<1x32xf32> to vector<8x32xf32>
    %14 = arith.addf %11, %13 : vector<8x32xf32>
    %cst_11 = arith.constant 0.000000e+00 : f32
    %15 = vector.broadcast %cst_11 : f32 to vector<8x32xf32>
    %16 = arith.maximumf %14, %15 : vector<8x32xf32>
    %c0_12 = arith.constant 0 : index
    %c0_13 = arith.constant 0 : index
    %17 = vector.load %arg7[%c0_12, %c0_13] : memref<32x16xbf16, #tpu.memory_space<vmem>>, vector<32x16xbf16>
    %18 = arith.truncf %16 : vector<8x32xf32> to vector<8x32xbf16>
    %cst_14 = arith.constant dense<0.000000e+00> : vector<8x16xf32>
    %19 = tpu.matmul %18, %17, %cst_14 {dimension_numbers = #tpu.dot_dimension_numbers<[1], [0], [0], [1], [0, 0, 1, 1], [], []>} : vector<8x32xbf16>, vector<32x16xbf16>, vector<8x16xf32> -> vector<8x16xf32>
    %c0_15 = arith.constant 0 : index
    %c0_16 = arith.constant 0 : index
    %20 = vector.load %arg8[%c0_15, %c0_16] : memref<1x16xf32, #tpu.memory_space<vmem>>, vector<1x16xf32>
    %21 = vector.broadcast %20 : vector<1x16xf32> to vector<8x16xf32>
    %22 = arith.addf %19, %21 : vector<8x16xf32>
    %cst_17 = arith.constant 0.000000e+00 : f32
    %23 = vector.broadcast %cst_17 : f32 to vector<8x16xf32>
    %24 = arith.maximumf %22, %23 : vector<8x16xf32>
    %c0_18 = arith.constant 0 : index
    %c0_19 = arith.constant 0 : index
    %25 = vector.load %arg9[%c0_18, %c0_19] : memref<16x8xbf16, #tpu.memory_space<vmem>>, vector<16x8xbf16>
    %26 = arith.truncf %24 : vector<8x16xf32> to vector<8x16xbf16>
    %cst_20 = arith.constant dense<0.000000e+00> : vector<8x8xf32>
    %27 = tpu.matmul %26, %25, %cst_20 {dimension_numbers = #tpu.dot_dimension_numbers<[1], [0], [0], [1], [0, 0, 1, 1], [], []>} : vector<8x16xbf16>, vector<16x8xbf16>, vector<8x8xf32> -> vector<8x8xf32>
    %c0_21 = arith.constant 0 : index
    %c0_22 = arith.constant 0 : index
    %28 = vector.load %arg10[%c0_21, %c0_22] : memref<1x8xf32, #tpu.memory_space<vmem>>, vector<1x8xf32>
    %29 = vector.broadcast %28 : vector<1x8xf32> to vector<8x8xf32>
    %30 = arith.addf %27, %29 : vector<8x8xf32>
    %c0_23 = arith.constant 0 : index
    %c0_24 = arith.constant 0 : index
    %31 = vector.load %arg11[%c0_23, %c0_24] : memref<8x16xbf16, #tpu.memory_space<vmem>>, vector<8x16xbf16>
    %32 = arith.truncf %30 : vector<8x8xf32> to vector<8x8xbf16>
    %cst_25 = arith.constant dense<0.000000e+00> : vector<8x16xf32>
    %33 = tpu.matmul %32, %31, %cst_25 {dimension_numbers = #tpu.dot_dimension_numbers<[1], [0], [0], [1], [0, 0, 1, 1], [], []>} : vector<8x8xbf16>, vector<8x16xbf16>, vector<8x16xf32> -> vector<8x16xf32>
    %c0_26 = arith.constant 0 : index
    %c0_27 = arith.constant 0 : index
    %34 = vector.load %arg12[%c0_26, %c0_27] : memref<1x16xf32, #tpu.memory_space<vmem>>, vector<1x16xf32>
    %35 = vector.broadcast %34 : vector<1x16xf32> to vector<8x16xf32>
    %36 = arith.addf %33, %35 : vector<8x16xf32>
    %cst_28 = arith.constant 0.000000e+00 : f32
    %37 = vector.broadcast %cst_28 : f32 to vector<8x16xf32>
    %38 = arith.maximumf %36, %37 : vector<8x16xf32>
    %c0_29 = arith.constant 0 : index
    %c0_30 = arith.constant 0 : index
    %39 = vector.load %arg13[%c0_29, %c0_30] : memref<16x32xbf16, #tpu.memory_space<vmem>>, vector<16x32xbf16>
    %40 = arith.truncf %38 : vector<8x16xf32> to vector<8x16xbf16>
    %cst_31 = arith.constant dense<0.000000e+00> : vector<8x32xf32>
    %41 = tpu.matmul %40, %39, %cst_31 {dimension_numbers = #tpu.dot_dimension_numbers<[1], [0], [0], [1], [0, 0, 1, 1], [], []>} : vector<8x16xbf16>, vector<16x32xbf16>, vector<8x32xf32> -> vector<8x32xf32>
    %c0_32 = arith.constant 0 : index
    %c0_33 = arith.constant 0 : index
    %42 = vector.load %arg14[%c0_32, %c0_33] : memref<1x32xf32, #tpu.memory_space<vmem>>, vector<1x32xf32>
    %43 = vector.broadcast %42 : vector<1x32xf32> to vector<8x32xf32>
    %44 = arith.addf %41, %43 : vector<8x32xf32>
    %cst_34 = arith.constant 0.000000e+00 : f32
    %45 = vector.broadcast %cst_34 : f32 to vector<8x32xf32>
    %46 = arith.maximumf %44, %45 : vector<8x32xf32>
    %c0_35 = arith.constant 0 : index
    %c0_36 = arith.constant 0 : index
    %47 = vector.load %arg15[%c0_35, %c0_36] : memref<32x64xbf16, #tpu.memory_space<vmem>>, vector<32x64xbf16>
    %48 = arith.truncf %46 : vector<8x32xf32> to vector<8x32xbf16>
    %cst_37 = arith.constant dense<0.000000e+00> : vector<8x64xf32>
    %49 = tpu.matmul %48, %47, %cst_37 {dimension_numbers = #tpu.dot_dimension_numbers<[1], [0], [0], [1], [0, 0, 1, 1], [], []>} : vector<8x32xbf16>, vector<32x64xbf16>, vector<8x64xf32> -> vector<8x64xf32>
    %c0_38 = arith.constant 0 : index
    %c0_39 = arith.constant 0 : index
    %50 = vector.load %arg16[%c0_38, %c0_39] : memref<1x64xf32, #tpu.memory_space<vmem>>, vector<1x64xf32>
    %51 = vector.broadcast %50 : vector<1x64xf32> to vector<8x64xf32>
    %52 = arith.addf %49, %51 : vector<8x64xf32>
    %cst_40 = arith.constant 0.000000e+00 : f32
    %53 = vector.broadcast %cst_40 : f32 to vector<8x64xf32>
    %54 = arith.maximumf %52, %53 : vector<8x64xf32>
    %c0_41 = arith.constant 0 : index
    %c0_42 = arith.constant 0 : index
    %55 = vector.load %arg17[%c0_41, %c0_42] : memref<64x96xbf16, #tpu.memory_space<vmem>>, vector<64x96xbf16>
    %56 = arith.truncf %54 : vector<8x64xf32> to vector<8x64xbf16>
    %cst_43 = arith.constant dense<0.000000e+00> : vector<8x96xf32>
    %57 = tpu.matmul %56, %55, %cst_43 {dimension_numbers = #tpu.dot_dimension_numbers<[1], [0], [0], [1], [0, 0, 1, 1], [], []>} : vector<8x64xbf16>, vector<64x96xbf16>, vector<8x96xf32> -> vector<8x96xf32>
    %c0_44 = arith.constant 0 : index
    %c0_45 = arith.constant 0 : index
    %58 = vector.load %arg18[%c0_44, %c0_45] : memref<1x96xf32, #tpu.memory_space<vmem>>, vector<1x96xf32>
    %59 = vector.broadcast %58 : vector<1x96xf32> to vector<8x96xf32>
    %60 = arith.addf %57, %59 : vector<8x96xf32>
    %61 = vector.extract_strided_slice %60 {offsets = [0, 0], sizes = [8, 32], strides = [1, 1]} : vector<8x96xf32> to vector<8x32xf32>
    %62 = vector.extract_strided_slice %60 {offsets = [0, 32], sizes = [8, 32], strides = [1, 1]} : vector<8x96xf32> to vector<8x32xf32>
    %63 = vector.extract_strided_slice %60 {offsets = [0, 64], sizes = [8, 32], strides = [1, 1]} : vector<8x96xf32> to vector<8x32xf32>
    %64 = arith.negf %61 : vector<8x32xf32>
    %65 = math.exp %64 : vector<8x32xf32>
    %cst_46 = arith.constant 1.000000e+00 : f32
    %66 = vector.broadcast %cst_46 : f32 to vector<8x32xf32>
    %67 = arith.addf %66, %65 : vector<8x32xf32>
    %68 = arith.divf %66, %67 : vector<8x32xf32>
    %cst_47 = arith.constant 0.000000e+00 : f32
    %69 = vector.broadcast %cst_47 : f32 to vector<8x32xf32>
    %70 = arith.maximumf %62, %69 : vector<8x32xf32>
    %71 = math.absf %62 : vector<8x32xf32>
    %cst_48 = arith.constant 0.000000e+00 : f32
    %72 = vector.broadcast %cst_48 : f32 to vector<8x32xf32>
    %73 = arith.subf %72, %71 : vector<8x32xf32>
    %74 = math.exp %73 : vector<8x32xf32>
    %75 = math.log1p %74 : vector<8x32xf32>
    %76 = arith.addf %70, %75 : vector<8x32xf32>
    %cst_49 = arith.constant 9.99999974E-5 : f32
    %cst_50 = arith.constant 1.000000e+04 : f32
    %77 = vector.broadcast %cst_49 : f32 to vector<8x32xf32>
    %78 = arith.maximumf %77, %76 : vector<8x32xf32>
    %79 = vector.broadcast %cst_50 : f32 to vector<8x32xf32>
    %80 = arith.minimumf %79, %78 : vector<8x32xf32>
    %81 = math.exp %63 : vector<8x32xf32>
    %cst_51 = arith.constant 9.99999974E-6 : f32
    %cst_52 = arith.constant 1.000000e+06 : f32
    %82 = vector.broadcast %cst_51 : f32 to vector<8x32xf32>
    %83 = arith.maximumf %82, %81 : vector<8x32xf32>
    %84 = vector.broadcast %cst_52 : f32 to vector<8x32xf32>
    %85 = arith.minimumf %84, %83 : vector<8x32xf32>
    %c0_53 = arith.constant 0 : index
    %c0_54 = arith.constant 0 : index
    %86 = vector.load %arg2[%c0_53, %c0_54] : memref<8x1xf32, #tpu.memory_space<vmem>>, vector<8x1xf32>
    %87 = vector.broadcast %86 : vector<8x1xf32> to vector<8x32xf32>
    %88 = arith.mulf %85, %87 : vector<8x32xf32>
    %c0_55 = arith.constant 0 : index
    %c0_56 = arith.constant 0 : index
    %89 = vector.load %arg19[%c0_55, %c0_56] : memref<8x64xf32, #tpu.memory_space<vmem>>, vector<8x64xf32>
    tpu.vector_store %arg19[%c0_55, %c0_56], %8 {strides = array<i32>} : memref<8x64xf32, #tpu.memory_space<vmem>>, vector<8x64xf32>,
    %c0_57 = arith.constant 0 : index
    %c0_58 = arith.constant 0 : index
    %90 = vector.load %arg20[%c0_57, %c0_58] : memref<8x32xf32, #tpu.memory_space<vmem>>, vector<8x32xf32>
    tpu.vector_store %arg20[%c0_57, %c0_58], %16 {strides = array<i32>} : memref<8x32xf32, #tpu.memory_space<vmem>>, vector<8x32xf32>,
    %c0_59 = arith.constant 0 : index
    %c0_60 = arith.constant 0 : index
    %91 = vector.load %arg21[%c0_59, %c0_60] : memref<8x16xf32, #tpu.memory_space<vmem>>, vector<8x16xf32>
    tpu.vector_store %arg21[%c0_59, %c0_60], %24 {strides = array<i32>} : memref<8x16xf32, #tpu.memory_space<vmem>>, vector<8x16xf32>,
    %c0_61 = arith.constant 0 : index
    %c0_62 = arith.constant 0 : index
    %92 = vector.load %arg22[%c0_61, %c0_62] : memref<8x8xf32, #tpu.memory_space<vmem>>, vector<8x8xf32>
    tpu.vector_store %arg22[%c0_61, %c0_62], %30 {strides = array<i32>} : memref<8x8xf32, #tpu.memory_space<vmem>>, vector<8x8xf32>,
    %c0_63 = arith.constant 0 : index
    %c0_64 = arith.constant 0 : index
    %93 = vector.load %arg23[%c0_63, %c0_64] : memref<8x32xf32, #tpu.memory_space<vmem>>, vector<8x32xf32>
    tpu.vector_store %arg23[%c0_63, %c0_64], %88 {strides = array<i32>} : memref<8x32xf32, #tpu.memory_space<vmem>>, vector<8x32xf32>,
    %c0_65 = arith.constant 0 : index
    %c0_66 = arith.constant 0 : index
    %94 = vector.load %arg24[%c0_65, %c0_66] : memref<8x32xf32, #tpu.memory_space<vmem>>, vector<8x32xf32>
    tpu.vector_store %arg24[%c0_65, %c0_66], %80 {strides = array<i32>} : memref<8x32xf32, #tpu.memory_space<vmem>>, vector<8x32xf32>,
    %c0_67 = arith.constant 0 : index
    %c0_68 = arith.constant 0 : index
    %95 = vector.load %arg25[%c0_67, %c0_68] : memref<8x32xf32, #tpu.memory_space<vmem>>, vector<8x32xf32>
    tpu.vector_store %arg25[%c0_67, %c0_68], %68 {strides = array<i32>} : memref<8x32xf32, #tpu.memory_space<vmem>>, vector<8x32xf32>,
    return
  }
  func.func @transform_0(%arg0: i32) -> (i32, i32) {
    %c0_i32 = arith.constant 0 : i32
    %c0_i32_0 = arith.constant 0 : i32
    return %arg0, %c0_i32 : i32, i32
  }
  func.func @transform_1(%arg0: i32) -> (i32, i32) {
    %c0_i32 = arith.constant 0 : i32
    %c0_i32_0 = arith.constant 0 : i32
    return %arg0, %c0_i32 : i32, i32
  }
  func.func @transform_2(%arg0: i32) -> (i32, i32) {
    %c0_i32 = arith.constant 0 : i32
    %c0_i32_0 = arith.constant 0 : i32
    %c0_i32_1 = arith.constant 0 : i32
    return %c0_i32, %c0_i32_0 : i32, i32
  }
  func.func @transform_3(%arg0: i32) -> (i32, i32) {
    %c0_i32 = arith.constant 0 : i32
    %c0_i32_0 = arith.constant 0 : i32
    %c0_i32_1 = arith.constant 0 : i32
    return %c0_i32, %c0_i32_0 : i32, i32
  }
  func.func @transform_4(%arg0: i32) -> (i32, i32) {
    %c0_i32 = arith.constant 0 : i32
    %c0_i32_0 = arith.constant 0 : i32
    %c0_i32_1 = arith.constant 0 : i32
    return %c0_i32, %c0_i32_0 : i32, i32
  }
  func.func @transform_5(%arg0: i32) -> (i32, i32) {
    %c0_i32 = arith.constant 0 : i32
    %c0_i32_0 = arith.constant 0 : i32
    %c0_i32_1 = arith.constant 0 : i32
    return %c0_i32, %c0_i32_0 : i32, i32
  }
  func.func @transform_6(%arg0: i32) -> (i32, i32) {
    %c0_i32 = arith.constant 0 : i32
    %c0_i32_0 = arith.constant 0 : i32
    %c0_i32_1 = arith.constant 0 : i32
    return %c0_i32, %c0_i32_0 : i32, i32
  }
  func.func @transform_7(%arg0: i32) -> (i32, i32) {
    %c0_i32 = arith.constant 0 : i32
    %c0_i32_0 = arith.constant 0 : i32
    %c0_i32_1 = arith.constant 0 : i32
    return %c0_i32, %c0_i32_0 : i32, i32
  }
  func.func @transform_8(%arg0: i32) -> (i32, i32) {
    %c0_i32 = arith.constant 0 : i32
    %c0_i32_0 = arith.constant 0 : i32
    %c0_i32_1 = arith.constant 0 : i32
    return %c0_i32, %c0_i32_0 : i32, i32
  }
  func.func @transform_9(%arg0: i32) -> (i32, i32) {
    %c0_i32 = arith.constant 0 : i32
    %c0_i32_0 = arith.constant 0 : i32
    %c0_i32_1 = arith.constant 0 : i32
    return %c0_i32, %c0_i32_0 : i32, i32
  }
  func.func @transform_10(%arg0: i32) -> (i32, i32) {
    %c0_i32 = arith.constant 0 : i32
    %c0_i32_0 = arith.constant 0 : i32
    %c0_i32_1 = arith.constant 0 : i32
    return %c0_i32, %c0_i32_0 : i32, i32
  }
  func.func @transform_11(%arg0: i32) -> (i32, i32) {
    %c0_i32 = arith.constant 0 : i32
    %c0_i32_0 = arith.constant 0 : i32
    %c0_i32_1 = arith.constant 0 : i32
    return %c0_i32, %c0_i32_0 : i32, i32
  }
  func.func @transform_12(%arg0: i32) -> (i32, i32) {
    %c0_i32 = arith.constant 0 : i32
    %c0_i32_0 = arith.constant 0 : i32
    %c0_i32_1 = arith.constant 0 : i32
    return %c0_i32, %c0_i32_0 : i32, i32
  }
  func.func @transform_13(%arg0: i32) -> (i32, i32) {
    %c0_i32 = arith.constant 0 : i32
    %c0_i32_0 = arith.constant 0 : i32
    %c0_i32_1 = arith.constant 0 : i32
    return %c0_i32, %c0_i32_0 : i32, i32
  }
  func.func @transform_14(%arg0: i32) -> (i32, i32) {
    %c0_i32 = arith.constant 0 : i32
    %c0_i32_0 = arith.constant 0 : i32
    %c0_i32_1 = arith.constant 0 : i32
    return %c0_i32, %c0_i32_0 : i32, i32
  }
  func.func @transform_15(%arg0: i32) -> (i32, i32) {
    %c0_i32 = arith.constant 0 : i32
    %c0_i32_0 = arith.constant 0 : i32
    %c0_i32_1 = arith.constant 0 : i32
    return %c0_i32, %c0_i32_0 : i32, i32
  }
  func.func @transform_16(%arg0: i32) -> (i32, i32) {
    %c0_i32 = arith.constant 0 : i32
    %c0_i32_0 = arith.constant 0 : i32
    %c0_i32_1 = arith.constant 0 : i32
    return %c0_i32, %c0_i32_0 : i32, i32
  }
  func.func @transform_17(%arg0: i32) -> (i32, i32) {
    %c0_i32 = arith.constant 0 : i32
    %c0_i32_0 = arith.constant 0 : i32
    %c0_i32_1 = arith.constant 0 : i32
    return %c0_i32, %c0_i32_0 : i32, i32
  }
  func.func @transform_18(%arg0: i32) -> (i32, i32) {
    %c0_i32 = arith.constant 0 : i32
    %c0_i32_0 = arith.constant 0 : i32
    return %arg0, %c0_i32 : i32, i32
  }
  func.func @transform_19(%arg0: i32) -> (i32, i32) {
    %c0_i32 = arith.constant 0 : i32
    %c0_i32_0 = arith.constant 0 : i32
    return %arg0, %c0_i32 : i32, i32
  }
  func.func @transform_20(%arg0: i32) -> (i32, i32) {
    %c0_i32 = arith.constant 0 : i32
    %c0_i32_0 = arith.constant 0 : i32
    return %arg0, %c0_i32 : i32, i32
  }
  func.func @transform_21(%arg0: i32) -> (i32, i32) {
    %c0_i32 = arith.constant 0 : i32
    %c0_i32_0 = arith.constant 0 : i32
    return %arg0, %c0_i32 : i32, i32
  }
  func.func @transform_22(%arg0: i32) -> (i32, i32) {
    %c0_i32 = arith.constant 0 : i32
    %c0_i32_0 = arith.constant 0 : i32
    return %arg0, %c0_i32 : i32, i32
  }
  func.func @transform_23(%arg0: i32) -> (i32, i32) {
    %c0_i32 = arith.constant 0 : i32
    %c0_i32_0 = arith.constant 0 : i32
    return %arg0, %c0_i32 : i32, i32
  }
  func.func @transform_24(%arg0: i32) -> (i32, i32) {
    %c0_i32 = arith.constant 0 : i32
    %c0_i32_0 = arith.constant 0 : i32
    return %arg0, %c0_i32 : i32, i32
  }
}

</mosaic_0001>

<llo_original>
// kernel: tpu_custom_call.1
$region0: #{tpu_custom_call.1}
  #allocation0 [shape = 'u32[]', space=smem, size = 0x4, offset = 0x4, fixed_abs, tag = 'smem constant byte address 0x4 - core index']
  #allocation1 [shape = 'u32[144,128]{1,0:T(1,128)}', space=vmem, size = 0x12000, scoped, tag = 'internal scratch']
  %s0 = inlined_call_operand.hbm [shape: f32[8,32], index: 0, kind: input, shape index: {}]
  %s1 = inlined_call_operand.vmem [shape: f32[8,1], index: 1, kind: input, shape index: {}]
  %s2 = inlined_call_operand.vmem [shape: bf16[32,64], index: 2, kind: input, shape index: {}]
  %s3 = inlined_call_operand.hbm [shape: f32[1,64], index: 3, kind: input, shape index: {}]
  %s4 = inlined_call_operand.vmem [shape: bf16[64,32], index: 4, kind: input, shape index: {}]
  %s5 = inlined_call_operand.vmem [shape: f32[1,32], index: 5, kind: input, shape index: {}]
  %s6 = inlined_call_operand.vmem [shape: bf16[32,16], index: 6, kind: input, shape index: {}]
  %s7 = inlined_call_operand.hbm [shape: f32[1,16], index: 7, kind: input, shape index: {}]
  %s8 = inlined_call_operand.vmem [shape: bf16[16,8], index: 8, kind: input, shape index: {}]
  %s9 = inlined_call_operand.vmem [shape: f32[1,8], index: 9, kind: input, shape index: {}]
  %s10 = inlined_call_operand.vmem [shape: bf16[8,16], index: 10, kind: input, shape index: {}]
  %s11 = inlined_call_operand.vmem [shape: f32[1,16], index: 11, kind: input, shape index: {}]
  %s12 = inlined_call_operand.vmem [shape: bf16[16,32], index: 12, kind: input, shape index: {}]
  %s13 = inlined_call_operand.vmem [shape: f32[1,32], index: 13, kind: input, shape index: {}]
  %s14 = inlined_call_operand.vmem [shape: bf16[32,64], index: 14, kind: input, shape index: {}]
  %s15 = inlined_call_operand.vmem [shape: f32[1,64], index: 15, kind: input, shape index: {}]
  %s16 = inlined_call_operand.vmem [shape: bf16[64,96], index: 16, kind: input, shape index: {}]
  %s17 = inlined_call_operand.vmem [shape: f32[1,96], index: 17, kind: input, shape index: {}]
  %s18 = inlined_call_operand.hbm [shape: f32[8,64], index: 18, kind: output, shape index: {0}]
  %s19 = inlined_call_operand.hbm [shape: f32[8,32], index: 19, kind: output, shape index: {1}]
  %s20 = inlined_call_operand.hbm [shape: f32[8,16], index: 20, kind: output, shape index: {2}]
  %s21 = inlined_call_operand.hbm [shape: f32[8,8], index: 21, kind: output, shape index: {3}]
  %s22 = inlined_call_operand.hbm [shape: f32[8,32], index: 22, kind: output, shape index: {4}]
  %s23 = inlined_call_operand.hbm [shape: f32[8,32], index: 23, kind: output, shape index: {5}]
  %s24 = inlined_call_operand.hbm [shape: f32[8,32], index: 24, kind: output, shape index: {6}]
  %25 = xla_tuple %s18, %s19, %s20, %s21, %s22, %s23, %s24
  %s26 = sld [smem:[#allocation0]]
  $region142: #{tpu_custom_call.1} parent=0
    _
  %s28 = ssub.s32 1, %s26
  %s29 = scalar_select 0, %s28, %s26
  $region1: #{tpu_custom_call.1} parent=0
    #allocation2 [shape = 'u8[4096]{0}', space=vmem, size = 0x1000, scoped, tag = 'input window, operand 0, single buffered']
    #allocation3 [shape = 's32[1]{0}', space=sflag, size = 0x4, scoped, tag = 'scoped memory for tpu_custom_call.1']
    #allocation4 [shape = 's32[1]{0}', space=sflag, size = 0x4, scoped, tag = 'scoped memory for tpu_custom_call.1']
    #allocation5 [shape = 'u8[512]{0}', space=vmem, size = 0x400, scoped, tag = 'input window, operand 3, single buffered']
    #allocation6 [shape = 's32[1]{0}', space=sflag, size = 0x4, scoped, tag = 'scoped memory for tpu_custom_call.1']
    #allocation7 [shape = 'u8[512]{0}', space=vmem, size = 0x400, scoped, tag = 'input window, operand 7, single buffered']
    #allocation8 [shape = 'u8[4096]{0}', space=vmem, size = 0x1000, scoped, tag = 'output window, operand 0, single buffered']
    #allocation9 [shape = 'u8[4096]{0}', space=vmem, size = 0x1000, scoped, tag = 'output window, operand 1, single buffered']
    #allocation10 [shape = 's32[1]{0}', space=sflag, size = 0x4, scoped, tag = 'scoped memory for tpu_custom_call.1']
    #allocation11 [shape = 'u8[4096]{0}', space=vmem, size = 0x1000, scoped, tag = 'output window, operand 2, single buffered']
    #allocation12 [shape = 'u8[4096]{0}', space=vmem, size = 0x1000, scoped, tag = 'output window, operand 3, single buffered']
    #allocation13 [shape = 's32[1]{0}', space=sflag, size = 0x4, scoped, tag = 'scoped memory for tpu_custom_call.1']
    #allocation14 [shape = 'u8[4096]{0}', space=vmem, size = 0x1000, scoped, tag = 'output window, operand 4, single buffered']
    #allocation15 [shape = 'u8[4096]{0}', space=vmem, size = 0x1000, scoped, tag = 'output window, operand 5, single buffered']
    #allocation16 [shape = 's32[1]{0}', space=sflag, size = 0x4, scoped, tag = 'scoped memory for tpu_custom_call.1']
    #allocation17 [shape = 'u8[4096]{0}', space=vmem, size = 0x1000, scoped, tag = 'output window, operand 6, single buffered']
    %30 = vsyncpa [#allocation3], 0
    %31 = vsyncpa [#allocation6], 0
    %32 = vsyncpa [#allocation4], 0
    %33 = vsyncpa [#allocation10], 0
    %34 = vsyncpa [#allocation13], 0
    %35 = vsyncpa [#allocation16], 0
    // Predicated region
    $region2: #{tpu_custom_call.1} parent=1 // pred_check
      _
    $region3: #{tpu_custom_call.1} parent=1 // pred_check_branch
      %37 = sbr.rel (0) target = $region5
    $region4: #{tpu_custom_call.1} parent=1 // pred_region
      %s39 = ssub.s32 128, 128
      %40 = vsyncadd [#allocation3], %s39
      %s42 = sshll.u32 [#allocation2], 4
      %s43 = int_to_ptr.vmem [resolvable:$true] %s42
      %45 = dma.hbm_to_vmem [thread:$0]  %s0, 128, %s43, [#allocation3]
    $region5: #{tpu_custom_call.1} parent=1 // pred_fallthru
      _
    // Predicated region
    $region6: #{tpu_custom_call.1} parent=1 // pred_check
      _
    $region7: #{tpu_custom_call.1} parent=1 // pred_check_branch
      %47 = sbr.rel (0) target = $region9
    $region8: #{tpu_custom_call.1} parent=1 // pred_region
      _
    $region9: #{tpu_custom_call.1} parent=1 // pred_fallthru
      _
    // Predicated region
    $region10: #{tpu_custom_call.1} parent=1 // pred_check
      _
    $region11: #{tpu_custom_call.1} parent=1 // pred_check_branch
      %49 = sbr.rel (0) target = $region13
    $region12: #{tpu_custom_call.1} parent=1 // pred_region
      _
    $region13: #{tpu_custom_call.1} parent=1 // pred_fallthru
      _
    // Predicated region
    $region14: #{tpu_custom_call.1} parent=1 // pred_check
      _
    $region15: #{tpu_custom_call.1} parent=1 // pred_check_branch
      %51 = sbr.rel (0) target = $region17
    $region16: #{tpu_custom_call.1} parent=1 // pred_region
      %s53 = ssub.s32 16, 16
      %54 = vsyncadd [#allocation6], %s53
      %s56 = sshll.u32 [#allocation5], 4
      %s57 = int_to_ptr.vmem [resolvable:$true] %s56
      %59 = dma.hbm_to_vmem [thread:$0]  %s3, 16, %s57, [#allocation6]
    $region17: #{tpu_custom_call.1} parent=1 // pred_fallthru
      _
    // Predicated region
    $region18: #{tpu_custom_call.1} parent=1 // pred_check
      _
    $region19: #{tpu_custom_call.1} parent=1 // pred_check_branch
      %61 = sbr.rel (0) target = $region21
    $region20: #{tpu_custom_call.1} parent=1 // pred_region
      _
    $region21: #{tpu_custom_call.1} parent=1 // pred_fallthru
      _
    // Predicated region
    $region22: #{tpu_custom_call.1} parent=1 // pred_check
      _
    $region23: #{tpu_custom_call.1} parent=1 // pred_check_branch
      %63 = sbr.rel (0) target = $region25
    $region24: #{tpu_custom_call.1} parent=1 // pred_region
      _
    $region25: #{tpu_custom_call.1} parent=1 // pred_fallthru
      _
    // Predicated region
    $region26: #{tpu_custom_call.1} parent=1 // pred_check
      _
    $region27: #{tpu_custom_call.1} parent=1 // pred_check_branch
      %65 = sbr.rel (0) target = $region29
    $region28: #{tpu_custom_call.1} parent=1 // pred_region
      _
    $region29: #{tpu_custom_call.1} parent=1 // pred_fallthru
      _
    // Predicated region
    $region30: #{tpu_custom_call.1} parent=1 // pred_check
      _
    $region31: #{tpu_custom_call.1} parent=1 // pred_check_branch
      %67 = sbr.rel (0) target = $region33
    $region32: #{tpu_custom_call.1} parent=1 // pred_region
      %s69 = ssub.s32 16, 16
      %70 = vsyncadd [#allocation6], %s69
      %s72 = sshll.u32 [#allocation7], 4
      %s73 = int_to_ptr.vmem [resolvable:$true] %s72
      %75 = dma.hbm_to_vmem [thread:$0]  %s7, 16, %s73, [#allocation6]
    $region33: #{tpu_custom_call.1} parent=1 // pred_fallthru
      _
    // Predicated region
    $region34: #{tpu_custom_call.1} parent=1 // pred_check
      _
    $region35: #{tpu_custom_call.1} parent=1 // pred_check_branch
      %77 = sbr.rel (0) target = $region37
    $region36: #{tpu_custom_call.1} parent=1 // pred_region
      _
    $region37: #{tpu_custom_call.1} parent=1 // pred_fallthru
      _
    // Predicated region
    $region38: #{tpu_custom_call.1} parent=1 // pred_check
      _
    $region39: #{tpu_custom_call.1} parent=1 // pred_check_branch
      %79 = sbr.rel (0) target = $region41
    $region40: #{tpu_custom_call.1} parent=1 // pred_region
      _
    $region41: #{tpu_custom_call.1} parent=1 // pred_fallthru
      _
    // Predicated region
    $region42: #{tpu_custom_call.1} parent=1 // pred_check
      _
    $region43: #{tpu_custom_call.1} parent=1 // pred_check_branch
      %81 = sbr.rel (0) target = $region45
    $region44: #{tpu_custom_call.1} parent=1 // pred_region
      _
    $region45: #{tpu_custom_call.1} parent=1 // pred_fallthru
      _
    // Predicated region
    $region46: #{tpu_custom_call.1} parent=1 // pred_check
      _
    $region47: #{tpu_custom_call.1} parent=1 // pred_check_branch
      %83 = sbr.rel (0) target = $region49
    $region48: #{tpu_custom_call.1} parent=1 // pred_region
      _
    $region49: #{tpu_custom_call.1} parent=1 // pred_fallthru
      _
    // Predicated region
    $region50: #{tpu_custom_call.1} parent=1 // pred_check
      _
    $region51: #{tpu_custom_call.1} parent=1 // pred_check_branch
      %85 = sbr.rel (0) target = $region53
    $region52: #{tpu_custom_call.1} parent=1 // pred_region
      _
    $region53: #{tpu_custom_call.1} parent=1 // pred_fallthru
      _
    // Predicated region
    $region54: #{tpu_custom_call.1} parent=1 // pred_check
      _
    $region55: #{tpu_custom_call.1} parent=1 // pred_check_branch
      %87 = sbr.rel (0) target = $region57
    $region56: #{tpu_custom_call.1} parent=1 // pred_region
      _
    $region57: #{tpu_custom_call.1} parent=1 // pred_fallthru
      _
    // Predicated region
    $region58: #{tpu_custom_call.1} parent=1 // pred_check
      _
    $region59: #{tpu_custom_call.1} parent=1 // pred_check_branch
      %89 = sbr.rel (0) target = $region61
    $region60: #{tpu_custom_call.1} parent=1 // pred_region
      _
    $region61: #{tpu_custom_call.1} parent=1 // pred_fallthru
      _
    // Predicated region
    $region62: #{tpu_custom_call.1} parent=1 // pred_check
      _
    $region63: #{tpu_custom_call.1} parent=1 // pred_check_branch
      %91 = sbr.rel (0) target = $region65
    $region64: #{tpu_custom_call.1} parent=1 // pred_region
      _
    $region65: #{tpu_custom_call.1} parent=1 // pred_fallthru
      _
    // Predicated region
    $region66: #{tpu_custom_call.1} parent=1 // pred_check
      _
    $region67: #{tpu_custom_call.1} parent=1 // pred_check_branch
      %93 = sbr.rel (0) target = $region69
    $region68: #{tpu_custom_call.1} parent=1 // pred_region
      _
    $region69: #{tpu_custom_call.1} parent=1 // pred_fallthru
      _
    // Predicated region
    $region70: #{tpu_custom_call.1} parent=1 // pred_check
      _
    $region71: #{tpu_custom_call.1} parent=1 // pred_check_branch
      %95 = sbr.rel (0) target = $region73
    $region72: #{tpu_custom_call.1} parent=1 // pred_region
      _
    $region73: #{tpu_custom_call.1} parent=1 // pred_fallthru
      _
    // Predicated region
    $region74: #{tpu_custom_call.1} parent=1 // pred_check
      _
    $region75: #{tpu_custom_call.1} parent=1 // pred_check_branch
      %97 = sbr.rel (0) target = $region77
    $region76: #{tpu_custom_call.1} parent=1 // pred_region
      %98 = dma.done [#allocation3], 128
    $region77: #{tpu_custom_call.1} parent=1 // pred_fallthru
      _
    // Predicated region
    $region78: #{tpu_custom_call.1} parent=1 // pred_check
      _
    $region79: #{tpu_custom_call.1} parent=1 // pred_check_branch
      %100 = sbr.rel (0) target = $region81
    $region80: #{tpu_custom_call.1} parent=1 // pred_region
      %101 = dma.done [#allocation6], 16
    $region81: #{tpu_custom_call.1} parent=1 // pred_fallthru
      _
    // Predicated region
    $region82: #{tpu_custom_call.1} parent=1 // pred_check
      _
    $region83: #{tpu_custom_call.1} parent=1 // pred_check_branch
      %103 = sbr.rel (0) target = $region85
    $region84: #{tpu_custom_call.1} parent=1 // pred_region
      %104 = dma.done [#allocation6], 16
    $region85: #{tpu_custom_call.1} parent=1 // pred_fallthru
      _
    %v106 = vld [vmem:[#allocation2] sm:$0xff]
    %v107 = vld [vmem:[%s2] sm:$0xf]
    %v108 = vld [vmem:[%s2 + $0x4] sm:$0xf]
    %v109 = vld [vmem:[%s2 + $0x8] sm:$0xf]
    %v110 = vld [vmem:[%s2 + $0xc] sm:$0xf]
    %v111 = vpack.c.bf16 %v106, %v106
    %v112 = vld [vmem:[#allocation5] sm:$0x1]
    %v114 = vlaneseq
    %v115 = vshrl.u32 %v114, 7
    %v116 = vsub.s32 0, %v115
    %v117 = vrot.slane %v112, %v116
    %v123 = vunpack.c.l.b16 %v107
    %v124 = vunpack.c.l.b16 %v108
    %v125 = vunpack.c.l.b16 %v109
    %v126 = vunpack.c.l.b16 %v110
    %v127 = vpack.c.b16 %v124, %v123
    %v128 = vpack.c.b16 %v126, %v125
    %vm131 = vcmask 261120
    %v133 = vsel %vm131, %v111, 0
    %135 = vmatprep.subr.bf16.mxu0 0
    %136 = vmatpush1.bf16.msra.mxu0 0
    %137 = vmatprep.subr.bf16.mxu0 0
    %138 = vmatpush1.bf16.msra.mxu0 0
    %139 = vmatprep.subr.bf16.mxu0 0
    %140 = vmatpush1.bf16.msra.mxu0 0
    %141 = vmatprep.subr.bf16.mxu0 0
    %142 = vmatpush1.bf16.msra.mxu0 0
    %143 = vmatprep.subr.bf16.mxu0 0
    %144 = vmatpush1.bf16.msra.mxu0 0
    %145 = vmatprep.subr.bf16.mxu0 0
    %146 = vmatpush1.bf16.msra.mxu0 0
    %147 = vmatprep.subr.bf16.mxu0 0
    %148 = vmatpush1.bf16.msra.mxu0 %v128
    %149 = vmatprep.subr.bf16.mxu0 0
    %150 = vmatpush1.bf16.msra.mxu0 %v127
    %151 = vmatprep.subr.bf16.mxu0 0
    %152 = vmatpush2.bf16.msra.mxu0 0
    %153 = vmatprep.subr.bf16.mxu0 0
    %154 = vmatpush2.bf16.msra.mxu0 0
    %155 = vmatprep.subr.bf16.mxu0 0
    %156 = vmatpush2.bf16.msra.mxu0 0
    %157 = vmatprep.subr.bf16.mxu0 0
    %158 = vmatpush2.bf16.msra.mxu0 0
    %159 = vmatprep.subr.bf16.mxu0 0
    %160 = vmatpush2.bf16.msra.mxu0 0
    %161 = vmatprep.subr.bf16.mxu0 0
    %162 = vmatpush2.bf16.msra.mxu0 0
    %163 = vmatprep.subr.bf16.mxu0 0
    %164 = vmatpush2.bf16.msra.mxu0 0
    %165 = vmatprep.subr.bf16.mxu0 0
    %166 = vmatpush2.bf16.msra.mxu0 0
    %167 = vmatprep.mubr.bf16.mxu0 0
    %168 = vmatmul.mubr.bf16.gmra.mxu0 %v133
    %v169 = vpop.f32.mrf.mxu0
    %v170 = vadd.f32 %v117, %v169
    %v171 = vpop.f32.mrf.mxu0
    %v172 = vpop.f32.mrf.mxu0
    %v173 = vpop.f32.mrf.mxu0
    %174 = vdwg.mxu0
    %v175 = vmax.f32 %v170, 0.0
    %v176 = vld [vmem:[%s4] sm:$0xf]
    %v177 = vld [vmem:[%s4 + $0x4] sm:$0xf]
    %v178 = vld [vmem:[%s4 + $0x8] sm:$0xf]
    %v179 = vld [vmem:[%s4 + $0xc] sm:$0xf]
    %v180 = vld [vmem:[%s4 + $0x10] sm:$0xf]
    %v181 = vld [vmem:[%s4 + $0x14] sm:$0xf]
    %v182 = vld [vmem:[%s4 + $0x18] sm:$0xf]
    %v183 = vld [vmem:[%s4 + $0x1c] sm:$0xf]
    %v184 = vpack.c.bf16 %v175, %v175
    %v185 = vld [vmem:[%s5] sm:$0x1]
    %v187 = vlaneseq
    %v188 = vshrl.u32 %v187, 7
    %v189 = vsub.s32 0, %v188
    %v190 = vrot.slane %v185, %v189
    %v200 = vunpack.c.l.b16 %v176
    %v201 = vunpack.c.l.b16 %v177
    %v202 = vunpack.c.l.b16 %v178
    %v203 = vunpack.c.l.b16 %v179
    %v204 = vunpack.c.l.b16 %v180
    %v205 = vunpack.c.l.b16 %v181
    %v206 = vunpack.c.l.b16 %v182
    %v207 = vunpack.c.l.b16 %v183
    %v208 = vpack.c.b16 %v201, %v200
    %v209 = vpack.c.b16 %v203, %v202
    %v210 = vpack.c.b16 %v205, %v204
    %v211 = vpack.c.b16 %v207, %v206
    %vm216 = vcmask 523264
    %v218 = vsel %vm216, %v184, 0
    %220 = vmatprep.subr.bf16.mxu0 0
    %221 = vmatpush1.bf16.msra.mxu0 0
    %222 = vmatprep.subr.bf16.mxu0 0
    %223 = vmatpush1.bf16.msra.mxu0 0
    %224 = vmatprep.subr.bf16.mxu0 0
    %225 = vmatpush1.bf16.msra.mxu0 0
    %226 = vmatprep.subr.bf16.mxu0 0
    %227 = vmatpush1.bf16.msra.mxu0 0
    %228 = vmatprep.subr.bf16.mxu0 0
    %229 = vmatpush1.bf16.msra.mxu0 %v211
    %230 = vmatprep.subr.bf16.mxu0 0
    %231 = vmatpush1.bf16.msra.mxu0 %v210
    %232 = vmatprep.subr.bf16.mxu0 0
    %233 = vmatpush1.bf16.msra.mxu0 %v209
    %234 = vmatprep.subr.bf16.mxu0 0
    %235 = vmatpush1.bf16.msra.mxu0 %v208
    %236 = vmatprep.subr.bf16.mxu0 0
    %237 = vmatpush2.bf16.msra.mxu0 0
    %238 = vmatprep.subr.bf16.mxu0 0
    %239 = vmatpush2.bf16.msra.mxu0 0
    %240 = vmatprep.subr.bf16.mxu0 0
    %241 = vmatpush2.bf16.msra.mxu0 0
    %242 = vmatprep.subr.bf16.mxu0 0
    %243 = vmatpush2.bf16.msra.mxu0 0
    %244 = vmatprep.subr.bf16.mxu0 0
    %245 = vmatpush2.bf16.msra.mxu0 0
    %246 = vmatprep.subr.bf16.mxu0 0
    %247 = vmatpush2.bf16.msra.mxu0 0
    %248 = vmatprep.subr.bf16.mxu0 0
    %249 = vmatpush2.bf16.msra.mxu0 0
    %250 = vmatprep.subr.bf16.mxu0 0
    %251 = vmatpush2.bf16.msra.mxu0 0
    %252 = vmatprep.mubr.bf16.mxu0 0
    %253 = vmatmul.mubr.bf16.gmra.mxu0 %v218
    %v254 = vpop.f32.mrf.mxu0
    %v255 = vadd.f32 %v190, %v254
    %v256 = vpop.f32.mrf.mxu0
    %v257 = vpop.f32.mrf.mxu0
    %v258 = vpop.f32.mrf.mxu0
    %259 = vdwg.mxu0
    %v260 = vmax.f32 %v255, 0.0
    %v261 = vld [vmem:[%s6] sm:$0xf]
    %v262 = vld [vmem:[%s6 + $0x4] sm:$0xf]
    %v263 = vld [vmem:[%s6 + $0x8] sm:$0xf]
    %v264 = vld [vmem:[%s6 + $0xc] sm:$0xf]
    %v265 = vpack.c.bf16 %v260, %v260
    %v266 = vld [vmem:[#allocation7] sm:$0x1]
    %v268 = vlaneseq
    %v269 = vshrl.u32 %v268, 7
    %v270 = vsub.s32 0, %v269
    %v271 = vrot.slane %v266, %v270
    %v277 = vunpack.c.l.b16 %v261
    %v278 = vunpack.c.l.b16 %v262
    %v279 = vunpack.c.l.b16 %v263
    %v280 = vunpack.c.l.b16 %v264
    %v281 = vpack.c.b16 %v278, %v277
    %v282 = vpack.c.b16 %v280, %v279
    %v286 = vsel %vm131, %v265, 0
    %288 = vmatprep.subr.bf16.mxu0 0
    %289 = vmatpush1.bf16.msra.mxu0 0
    %290 = vmatprep.subr.bf16.mxu0 0
    %291 = vmatpush1.bf16.msra.mxu0 0
    %292 = vmatprep.subr.bf16.mxu0 0
    %293 = vmatpush1.bf16.msra.mxu0 0
    %294 = vmatprep.subr.bf16.mxu0 0
    %295 = vmatpush1.bf16.msra.mxu0 0
    %296 = vmatprep.subr.bf16.mxu0 0
    %297 = vmatpush1.bf16.msra.mxu0 0
    %298 = vmatprep.subr.bf16.mxu0 0
    %299 = vmatpush1.bf16.msra.mxu0 0
    %300 = vmatprep.subr.bf16.mxu0 0
    %301 = vmatpush1.bf16.msra.mxu0 %v282
    %302 = vmatprep.subr.bf16.mxu0 0
    %303 = vmatpush1.bf16.msra.mxu0 %v281
    %304 = vmatprep.subr.bf16.mxu0 0
    %305 = vmatpush2.bf16.msra.mxu0 0
    %306 = vmatprep.subr.bf16.mxu0 0
    %307 = vmatpush2.bf16.msra.mxu0 0
    %308 = vmatprep.subr.bf16.mxu0 0
    %309 = vmatpush2.bf16.msra.mxu0 0
    %310 = vmatprep.subr.bf16.mxu0 0
    %311 = vmatpush2.bf16.msra.mxu0 0
    %312 = vmatprep.subr.bf16.mxu0 0
    %313 = vmatpush2.bf16.msra.mxu0 0
    %314 = vmatprep.subr.bf16.mxu0 0
    %315 = vmatpush2.bf16.msra.mxu0 0
    %316 = vmatprep.subr.bf16.mxu0 0
    %317 = vmatpush2.bf16.msra.mxu0 0
    %318 = vmatprep.subr.bf16.mxu0 0
    %319 = vmatpush2.bf16.msra.mxu0 0
    %320 = vmatprep.mubr.bf16.mxu0 0
    %321 = vmatmul.mubr.bf16.gmra.mxu0 %v286
    %v322 = vpop.f32.mrf.mxu0
    %v323 = vadd.f32 %v271, %v322
    %v324 = vpop.f32.mrf.mxu0
    %v325 = vpop.f32.mrf.mxu0
    %v326 = vpop.f32.mrf.mxu0
    %327 = vdwg.mxu0
    %v328 = vmax.f32 %v323, 0.0
    %v329 = vld [vmem:[%s8] sm:$0xf]
    %v330 = vld [vmem:[%s8 + $0x4] sm:$0xf]
    %v331 = vpack.c.bf16 %v328, %v328
    %v332 = vld [vmem:[%s9] sm:$0x1]
    %v334 = vlaneseq
    %v335 = vshrl.u32 %v334, 7
    %v336 = vsub.s32 0, %v335
    %v337 = vrot.slane %v332, %v336
    %v341 = vunpack.c.l.b16 %v329
    %v342 = vunpack.c.l.b16 %v330
    %v343 = vpack.c.b16 %v342, %v341
    %vm345 = vcmask 130048
    %v347 = vsel %vm345, %v331, 0
    %349 = vmatprep.subr.bf16.mxu0 0
    %350 = vmatpush1.bf16.msra.mxu0 0
    %351 = vmatprep.subr.bf16.mxu0 0
    %352 = vmatpush1.bf16.msra.mxu0 0
    %353 = vmatprep.subr.bf16.mxu0 0
    %354 = vmatpush1.bf16.msra.mxu0 0
    %355 = vmatprep.subr.bf16.mxu0 0
    %356 = vmatpush1.bf16.msra.mxu0 0
    %357 = vmatprep.subr.bf16.mxu0 0
    %358 = vmatpush1.bf16.msra.mxu0 0
    %359 = vmatprep.subr.bf16.mxu0 0
    %360 = vmatpush1.bf16.msra.mxu0 0
    %361 = vmatprep.subr.bf16.mxu0 0
    %362 = vmatpush1.bf16.msra.mxu0 0
    %363 = vmatprep.subr.bf16.mxu0 0
    %364 = vmatpush1.bf16.msra.mxu0 %v343
    %365 = vmatprep.subr.bf16.mxu0 0
    %366 = vmatpush2.bf16.msra.mxu0 0
    %367 = vmatprep.subr.bf16.mxu0 0
    %368 = vmatpush2.bf16.msra.mxu0 0
    %369 = vmatprep.subr.bf16.mxu0 0
    %370 = vmatpush2.bf16.msra.mxu0 0
    %371 = vmatprep.subr.bf16.mxu0 0
    %372 = vmatpush2.bf16.msra.mxu0 0
    %373 = vmatprep.subr.bf16.mxu0 0
    %374 = vmatpush2.bf16.msra.mxu0 0
    %375 = vmatprep.subr.bf16.mxu0 0
    %376 = vmatpush2.bf16.msra.mxu0 0
    %377 = vmatprep.subr.bf16.mxu0 0
    %378 = vmatpush2.bf16.msra.mxu0 0
    %379 = vmatprep.subr.bf16.mxu0 0
    %380 = vmatpush2.bf16.msra.mxu0 0
    %381 = vmatprep.mubr.bf16.mxu0 0
    %382 = vmatmul.mubr.bf16.gmra.mxu0 %v347
    %v383 = vpop.f32.mrf.mxu0
    %v384 = vadd.f32 %v337, %v383
    %v385 = vpop.f32.mrf.mxu0
    %v386 = vpop.f32.mrf.mxu0
    %v387 = vpop.f32.mrf.mxu0
    %388 = vdwg.mxu0
    %v389 = vld [vmem:[%s10] sm:$0xf]
    %v390 = vpack.c.bf16 %v384, %v384
    %v391 = vld [vmem:[%s11] sm:$0x1]
    %v393 = vlaneseq
    %v394 = vshrl.u32 %v393, 7
    %v395 = vsub.s32 0, %v394
    %v396 = vrot.slane %v391, %v395
    %vm398 = vcmask 64512
    %v400 = vsel %vm398, %v390, 0
    %vm402 = vcmask 1043456
    %v404 = vsel %vm402, %v389, 0
    %406 = vmatprep.subr.bf16.mxu0 0
    %407 = vmatpush1.bf16.msra.mxu0 0
    %408 = vmatprep.subr.bf16.mxu0 0
    %409 = vmatpush1.bf16.msra.mxu0 0
    %410 = vmatprep.subr.bf16.mxu0 0
    %411 = vmatpush1.bf16.msra.mxu0 0
    %412 = vmatprep.subr.bf16.mxu0 0
    %413 = vmatpush1.bf16.msra.mxu0 0
    %414 = vmatprep.subr.bf16.mxu0 0
    %415 = vmatpush1.bf16.msra.mxu0 0
    %416 = vmatprep.subr.bf16.mxu0 0
    %417 = vmatpush1.bf16.msra.mxu0 0
    %418 = vmatprep.subr.bf16.mxu0 0
    %419 = vmatpush1.bf16.msra.mxu0 0
    %420 = vmatprep.subr.bf16.mxu0 0
    %421 = vmatpush1.bf16.msra.mxu0 %v404
    %422 = vmatprep.subr.bf16.mxu0 0
    %423 = vmatpush2.bf16.msra.mxu0 0
    %424 = vmatprep.subr.bf16.mxu0 0
    %425 = vmatpush2.bf16.msra.mxu0 0
    %426 = vmatprep.subr.bf16.mxu0 0
    %427 = vmatpush2.bf16.msra.mxu0 0
    %428 = vmatprep.subr.bf16.mxu0 0
    %429 = vmatpush2.bf16.msra.mxu0 0
    %430 = vmatprep.subr.bf16.mxu0 0
    %431 = vmatpush2.bf16.msra.mxu0 0
    %432 = vmatprep.subr.bf16.mxu0 0
    %433 = vmatpush2.bf16.msra.mxu0 0
    %434 = vmatprep.subr.bf16.mxu0 0
    %435 = vmatpush2.bf16.msra.mxu0 0
    %436 = vmatprep.subr.bf16.mxu0 0
    %437 = vmatpush2.bf16.msra.mxu0 0
    %438 = vmatprep.mubr.bf16.mxu0 0
    %439 = vmatmul.mubr.bf16.gmra.mxu0 %v400
    %v440 = vpop.f32.mrf.mxu0
    %v441 = vadd.f32 %v396, %v440
    %v442 = vpop.f32.mrf.mxu0
    %v443 = vpop.f32.mrf.mxu0
    %v444 = vpop.f32.mrf.mxu0
    %445 = vdwg.mxu0
    %v446 = vmax.f32 %v441, 0.0
    %v447 = vld [vmem:[%s12] sm:$0xf]
    %v448 = vld [vmem:[%s12 + $0x4] sm:$0xf]
    %v449 = vpack.c.bf16 %v446, %v446
    %v450 = vld [vmem:[%s13] sm:$0x1]
    %v452 = vlaneseq
    %v453 = vshrl.u32 %v452, 7
    %v454 = vsub.s32 0, %v453
    %v455 = vrot.slane %v450, %v454
    %v459 = vunpack.c.l.b16 %v447
    %v460 = vunpack.c.l.b16 %v448
    %v461 = vpack.c.b16 %v460, %v459
    %v464 = vsel %vm345, %v449, 0
    %466 = vmatprep.subr.bf16.mxu0 0
    %467 = vmatpush1.bf16.msra.mxu0 0
    %468 = vmatprep.subr.bf16.mxu0 0
    %469 = vmatpush1.bf16.msra.mxu0 0
    %470 = vmatprep.subr.bf16.mxu0 0
    %471 = vmatpush1.bf16.msra.mxu0 0
    %472 = vmatprep.subr.bf16.mxu0 0
    %473 = vmatpush1.bf16.msra.mxu0 0
    %474 = vmatprep.subr.bf16.mxu0 0
    %475 = vmatpush1.bf16.msra.mxu0 0
    %476 = vmatprep.subr.bf16.mxu0 0
    %477 = vmatpush1.bf16.msra.mxu0 0
    %478 = vmatprep.subr.bf16.mxu0 0
    %479 = vmatpush1.bf16.msra.mxu0 0
    %480 = vmatprep.subr.bf16.mxu0 0
    %481 = vmatpush1.bf16.msra.mxu0 %v461
    %482 = vmatprep.subr.bf16.mxu0 0
    %483 = vmatpush2.bf16.msra.mxu0 0
    %484 = vmatprep.subr.bf16.mxu0 0
    %485 = vmatpush2.bf16.msra.mxu0 0
    %486 = vmatprep.subr.bf16.mxu0 0
    %487 = vmatpush2.bf16.msra.mxu0 0
    %488 = vmatprep.subr.bf16.mxu0 0
    %489 = vmatpush2.bf16.msra.mxu0 0
    %490 = vmatprep.subr.bf16.mxu0 0
    %491 = vmatpush2.bf16.msra.mxu0 0
    %492 = vmatprep.subr.bf16.mxu0 0
    %493 = vmatpush2.bf16.msra.mxu0 0
    %494 = vmatprep.subr.bf16.mxu0 0
    %495 = vmatpush2.bf16.msra.mxu0 0
    %496 = vmatprep.subr.bf16.mxu0 0
    %497 = vmatpush2.bf16.msra.mxu0 0
    %498 = vmatprep.mubr.bf16.mxu0 0
    %499 = vmatmul.mubr.bf16.gmra.mxu0 %v464
    %v500 = vpop.f32.mrf.mxu0
    %v501 = vadd.f32 %v455, %v500
    %v502 = vpop.f32.mrf.mxu0
    %v503 = vpop.f32.mrf.mxu0
    %v504 = vpop.f32.mrf.mxu0
    %505 = vdwg.mxu0
    %v506 = vmax.f32 %v501, 0.0
    %v507 = vld [vmem:[%s14] sm:$0xf]
    %v508 = vld [vmem:[%s14 + $0x4] sm:$0xf]
    %v509 = vld [vmem:[%s14 + $0x8] sm:$0xf]
    %v510 = vld [vmem:[%s14 + $0xc] sm:$0xf]
    %v511 = vpack.c.bf16 %v506, %v506
    %v512 = vld [vmem:[%s15] sm:$0x1]
    %v514 = vlaneseq
    %v515 = vshrl.u32 %v514, 7
    %v516 = vsub.s32 0, %v515
    %v517 = vrot.slane %v512, %v516
    %v523 = vunpack.c.l.b16 %v507
    %v524 = vunpack.c.l.b16 %v508
    %v525 = vunpack.c.l.b16 %v509
    %v526 = vunpack.c.l.b16 %v510
    %v527 = vpack.c.b16 %v524, %v523
    %v528 = vpack.c.b16 %v526, %v525
    %v532 = vsel %vm131, %v511, 0
    %534 = vmatprep.subr.bf16.mxu0 0
    %535 = vmatpush1.bf16.msra.mxu0 0
    %536 = vmatprep.subr.bf16.mxu0 0
    %537 = vmatpush1.bf16.msra.mxu0 0
    %538 = vmatprep.subr.bf16.mxu0 0
    %539 = vmatpush1.bf16.msra.mxu0 0
    %540 = vmatprep.subr.bf16.mxu0 0
    %541 = vmatpush1.bf16.msra.mxu0 0
    %542 = vmatprep.subr.bf16.mxu0 0
    %543 = vmatpush1.bf16.msra.mxu0 0
    %544 = vmatprep.subr.bf16.mxu0 0
    %545 = vmatpush1.bf16.msra.mxu0 0
    %546 = vmatprep.subr.bf16.mxu0 0
    %547 = vmatpush1.bf16.msra.mxu0 %v528
    %548 = vmatprep.subr.bf16.mxu0 0
    %549 = vmatpush1.bf16.msra.mxu0 %v527
    %550 = vmatprep.subr.bf16.mxu0 0
    %551 = vmatpush2.bf16.msra.mxu0 0
    %552 = vmatprep.subr.bf16.mxu0 0
    %553 = vmatpush2.bf16.msra.mxu0 0
    %554 = vmatprep.subr.bf16.mxu0 0
    %555 = vmatpush2.bf16.msra.mxu0 0
    %556 = vmatprep.subr.bf16.mxu0 0
    %557 = vmatpush2.bf16.msra.mxu0 0
    %558 = vmatprep.subr.bf16.mxu0 0
    %559 = vmatpush2.bf16.msra.mxu0 0
    %560 = vmatprep.subr.bf16.mxu0 0
    %561 = vmatpush2.bf16.msra.mxu0 0
    %562 = vmatprep.subr.bf16.mxu0 0
    %563 = vmatpush2.bf16.msra.mxu0 0
    %564 = vmatprep.subr.bf16.mxu0 0
    %565 = vmatpush2.bf16.msra.mxu0 0
    %566 = vmatprep.mubr.bf16.mxu0 0
    %567 = vmatmul.mubr.bf16.gmra.mxu0 %v532
    %v568 = vpop.f32.mrf.mxu0
    %v569 = vadd.f32 %v517, %v568
    %v570 = vpop.f32.mrf.mxu0
    %v571 = vpop.f32.mrf.mxu0
    %v572 = vpop.f32.mrf.mxu0
    %573 = vdwg.mxu0
    %v574 = vmax.f32 %v569, 0.0
    %v575 = vld [vmem:[%s16] sm:$0xf]
    %v576 = vld [vmem:[%s16 + $0x4] sm:$0xf]
    %v577 = vld [vmem:[%s16 + $0x8] sm:$0xf]
    %v578 = vld [vmem:[%s16 + $0xc] sm:$0xf]
    %v579 = vld [vmem:[%s16 + $0x10] sm:$0xf]
    %v580 = vld [vmem:[%s16 + $0x14] sm:$0xf]
    %v581 = vld [vmem:[%s16 + $0x18] sm:$0xf]
    %v582 = vld [vmem:[%s16 + $0x1c] sm:$0xf]
    %v583 = vpack.c.bf16 %v574, %v574
    %v584 = vld [vmem:[%s17] sm:$0x1]
    %v586 = vlaneseq
    %v587 = vshrl.u32 %v586, 7
    %v588 = vsub.s32 0, %v587
    %v589 = vrot.slane %v584, %v588
    %v599 = vunpack.c.l.b16 %v575
    %v600 = vunpack.c.l.b16 %v576
    %v601 = vunpack.c.l.b16 %v577
    %v602 = vunpack.c.l.b16 %v578
    %v603 = vunpack.c.l.b16 %v579
    %v604 = vunpack.c.l.b16 %v580
    %v605 = vunpack.c.l.b16 %v581
    %v606 = vunpack.c.l.b16 %v582
    %v607 = vpack.c.b16 %v600, %v599
    %v608 = vpack.c.b16 %v602, %v601
    %v609 = vpack.c.b16 %v604, %v603
    %v610 = vpack.c.b16 %v606, %v605
    %v616 = vsel %vm216, %v583, 0
    %618 = vmatprep.subr.bf16.mxu0 0
    %619 = vmatpush1.bf16.msra.mxu0 0
    %620 = vmatprep.subr.bf16.mxu0 0
    %621 = vmatpush1.bf16.msra.mxu0 0
    %622 = vmatprep.subr.bf16.mxu0 0
    %623 = vmatpush1.bf16.msra.mxu0 0
    %624 = vmatprep.subr.bf16.mxu0 0
    %625 = vmatpush1.bf16.msra.mxu0 0
    %626 = vmatprep.subr.bf16.mxu0 0
    %627 = vmatpush1.bf16.msra.mxu0 %v610
    %628 = vmatprep.subr.bf16.mxu0 0
    %629 = vmatpush1.bf16.msra.mxu0 %v609
    %630 = vmatprep.subr.bf16.mxu0 0
    %631 = vmatpush1.bf16.msra.mxu0 %v608
    %632 = vmatprep.subr.bf16.mxu0 0
    %633 = vmatpush1.bf16.msra.mxu0 %v607
    %634 = vmatprep.subr.bf16.mxu0 0
    %635 = vmatpush2.bf16.msra.mxu0 0
    %636 = vmatprep.subr.bf16.mxu0 0
    %637 = vmatpush2.bf16.msra.mxu0 0
    %638 = vmatprep.subr.bf16.mxu0 0
    %639 = vmatpush2.bf16.msra.mxu0 0
    %640 = vmatprep.subr.bf16.mxu0 0
    %641 = vmatpush2.bf16.msra.mxu0 0
    %642 = vmatprep.subr.bf16.mxu0 0
    %643 = vmatpush2.bf16.msra.mxu0 0
    %644 = vmatprep.subr.bf16.mxu0 0
    %645 = vmatpush2.bf16.msra.mxu0 0
    %646 = vmatprep.subr.bf16.mxu0 0
    %647 = vmatpush2.bf16.msra.mxu0 0
    %648 = vmatprep.subr.bf16.mxu0 0
    %649 = vmatpush2.bf16.msra.mxu0 0
    %650 = vmatprep.mubr.bf16.mxu0 0
    %651 = vmatmul.mubr.bf16.gmra.mxu0 %v616
    %v652 = vpop.f32.mrf.mxu0
    %v653 = vadd.f32 %v589, %v652
    %v654 = vpop.f32.mrf.mxu0
    %v655 = vpop.f32.mrf.mxu0
    %v656 = vpop.f32.mrf.mxu0
    %657 = vdwg.mxu0
    %v658 = vxor.u32 %v653, 2147483648
    %v659 = vmul.f32 %v658, 1.442695
    %v660 = vpow.pop %v659
    %v661 = vadd.f32 %v660, 1.0
    %v662 = vrcp.pop %v661
    %v663 = vmul.f32 1.0, %v662
    %v664 = vmax.f32 %v653, 0.0
    %v665 = vand.u32 2147483647, %v653
    %v666 = vsub.f32 0.0, %v665
    %v667 = vmul.f32 %v666, 1.442695
    %v668 = vpow.pop %v667
    %v669 = vadd.f32 %v668, 1.0
    %v670 = vlog2.pop %v669
    %v671 = vmul.f32 %v670, 0.6931472
    %v672 = vmul.f32 -0.5, %v668
    %v673 = vadd.f32 %v672, 1.0
    %v674 = vmul.f32 %v673, %v668
    %v675 = vand.u32 2147483647, %v668
    %vm676 = vcmp.lt.f32.partialorder %v675, 0.0004427343
    %v677 = vsel %vm676, %v674, %v671
    %v678 = vadd.f32 %v664, %v677
    %v679 = vmax.f32 %v678, 0.0001
    %v680 = vmin.f32 %v679, 10000.0
    %v681 = vmul.f32 %v653, 1.442695
    %v682 = vpow.pop %v681
    %v683 = vmax.f32 %v682, 1e-05
    %v684 = vmin.f32 %v683, 1000000.0
    %v685 = vld [vmem:[%s1] sm:$0xff]
    %687 = vset.pattern.permute.xlu0 0
    %688 = vperm.xlu0 %687, %v685
    %v689 = vpop.permute.xlu0 %688
    %v691 = vmul.f32 %v684, %v689
    %692 = vst.msk [vmem:[#allocation8] sm:$0xff] %vm216, %v175
    %693 = vst.msk [vmem:[#allocation9] sm:$0xff] %vm131, %v260
    %694 = vst.msk [vmem:[#allocation11] sm:$0xff] %vm345, %v328
    %695 = vst.msk [vmem:[#allocation12] sm:$0xff] %vm398, %v384
    %697 = vrot.lane.b32.xlu0 %v691, 64
    %v698 = vpop.permute.xlu0 %697
    %700 = vst.msk [vmem:[#allocation14] sm:$0xff] %vm131, %v698
    %702 = vrot.lane.b32.xlu0 %v680, 96
    %v703 = vpop.permute.xlu0 %702
    %705 = vst.msk [vmem:[#allocation15] sm:$0xff] %vm131, %v703
    %706 = vst.msk [vmem:[#allocation17] sm:$0xff] %vm131, %v663
    // Predicated region
    $region86: #{tpu_custom_call.1} parent=1 // pred_check
      _
    $region87: #{tpu_custom_call.1} parent=1 // pred_check_branch
      %708 = sbr.rel (0) target = $region89
    $region88: #{tpu_custom_call.1} parent=1 // pred_region
      %s710 = ssub.s32 128, 128
      %711 = vsyncadd [#allocation4], %s710
      %s713 = sshll.u32 [#allocation8], 4
      %s714 = int_to_ptr.vmem [resolvable:$true] %s713
      %716 = dma.vmem_to_hbm [thread:$0]  %s714, 128, %s18, [#allocation4]
    $region89: #{tpu_custom_call.1} parent=1 // pred_fallthru
      _
    // Predicated region
    $region90: #{tpu_custom_call.1} parent=1 // pred_check
      _
    $region91: #{tpu_custom_call.1} parent=1 // pred_check_branch
      %718 = sbr.rel (0) target = $region93
    $region92: #{tpu_custom_call.1} parent=1 // pred_region
      %s720 = ssub.s32 128, 128
      %721 = vsyncadd [#allocation10], %s720
      %s723 = sshll.u32 [#allocation9], 4
      %s724 = int_to_ptr.vmem [resolvable:$true] %s723
      %726 = dma.vmem_to_hbm [thread:$0]  %s724, 128, %s19, [#allocation10]
    $region93: #{tpu_custom_call.1} parent=1 // pred_fallthru
      _
    // Predicated region
    $region94: #{tpu_custom_call.1} parent=1 // pred_check
      _
    $region95: #{tpu_custom_call.1} parent=1 // pred_check_branch
      %728 = sbr.rel (0) target = $region97
    $region96: #{tpu_custom_call.1} parent=1 // pred_region
      %s730 = ssub.s32 128, 128
      %731 = vsyncadd [#allocation10], %s730
      %s733 = sshll.u32 [#allocation11], 4
      %s734 = int_to_ptr.vmem [resolvable:$true] %s733
      %736 = dma.vmem_to_hbm [thread:$0]  %s734, 128, %s20, [#allocation10]
    $region97: #{tpu_custom_call.1} parent=1 // pred_fallthru
      _
    // Predicated region
    $region98: #{tpu_custom_call.1} parent=1 // pred_check
      _
    $region99: #{tpu_custom_call.1} parent=1 // pred_check_branch
      %738 = sbr.rel (0) target = $region101
    $region100: #{tpu_custom_call.1} parent=1 // pred_region
      %s740 = ssub.s32 128, 128
      %741 = vsyncadd [#allocation13], %s740
      %s743 = sshll.u32 [#allocation12], 4
      %s744 = int_to_ptr.vmem [resolvable:$true] %s743
      %746 = dma.vmem_to_hbm [thread:$0]  %s744, 128, %s21, [#allocation13]
    $region101: #{tpu_custom_call.1} parent=1 // pred_fallthru
      _
    // Predicated region
    $region102: #{tpu_custom_call.1} parent=1 // pred_check
      _
    $region103: #{tpu_custom_call.1} parent=1 // pred_check_branch
      %748 = sbr.rel (0) target = $region105
    $region104: #{tpu_custom_call.1} parent=1 // pred_region
      %s750 = ssub.s32 128, 128
      %751 = vsyncadd [#allocation13], %s750
      %s753 = sshll.u32 [#allocation14], 4
      %s754 = int_to_ptr.vmem [resolvable:$true] %s753
      %756 = dma.vmem_to_hbm [thread:$0]  %s754, 128, %s22, [#allocation13]
    $region105: #{tpu_custom_call.1} parent=1 // pred_fallthru
      _
    // Predicated region
    $region106: #{tpu_custom_call.1} parent=1 // pred_check
      _
    $region107: #{tpu_custom_call.1} parent=1 // pred_check_branch
      %758 = sbr.rel (0) target = $region109
    $region108: #{tpu_custom_call.1} parent=1 // pred_region
      %s760 = ssub.s32 128, 128
      %761 = vsyncadd [#allocation16], %s760
      %s763 = sshll.u32 [#allocation15], 4
      %s764 = int_to_ptr.vmem [resolvable:$true] %s763
      %766 = dma.vmem_to_hbm [thread:$0]  %s764, 128, %s23, [#allocation16]
    $region109: #{tpu_custom_call.1} parent=1 // pred_fallthru
      _
    // Predicated region
    $region110: #{tpu_custom_call.1} parent=1 // pred_check
      _
    $region111: #{tpu_custom_call.1} parent=1 // pred_check_branch
      %768 = sbr.rel (0) target = $region113
    $region112: #{tpu_custom_call.1} parent=1 // pred_region
      %s770 = ssub.s32 128, 128
      %771 = vsyncadd [#allocation16], %s770
      %s773 = sshll.u32 [#allocation17], 4
      %s774 = int_to_ptr.vmem [resolvable:$true] %s773
      %776 = dma.vmem_to_hbm [thread:$0]  %s774, 128, %s24, [#allocation16]
    $region113: #{tpu_custom_call.1} parent=1 // pred_fallthru
      _
    // Predicated region
    $region114: #{tpu_custom_call.1} parent=1 // pred_check
      _
    $region115: #{tpu_custom_call.1} parent=1 // pred_check_branch
      %778 = sbr.rel (0) target = $region117
    $region116: #{tpu_custom_call.1} parent=1 // pred_region
      %779 = dma.done [#allocation4], 128
    $region117: #{tpu_custom_call.1} parent=1 // pred_fallthru
      _
    // Predicated region
    $region118: #{tpu_custom_call.1} parent=1 // pred_check
      _
    $region119: #{tpu_custom_call.1} parent=1 // pred_check_branch
      %781 = sbr.rel (0) target = $region121
    $region120: #{tpu_custom_call.1} parent=1 // pred_region
      %782 = dma.done [#allocation10], 128
    $region121: #{tpu_custom_call.1} parent=1 // pred_fallthru
      _
    // Predicated region
    $region122: #{tpu_custom_call.1} parent=1 // pred_check
      _
    $region123: #{tpu_custom_call.1} parent=1 // pred_check_branch
      %784 = sbr.rel (0) target = $region125
    $region124: #{tpu_custom_call.1} parent=1 // pred_region
      %785 = dma.done [#allocation10], 128
    $region125: #{tpu_custom_call.1} parent=1 // pred_fallthru
      _
    // Predicated region
    $region126: #{tpu_custom_call.1} parent=1 // pred_check
      _
    $region127: #{tpu_custom_call.1} parent=1 // pred_check_branch
      %787 = sbr.rel (0) target = $region129
    $region128: #{tpu_custom_call.1} parent=1 // pred_region
      %788 = dma.done [#allocation13], 128
    $region129: #{tpu_custom_call.1} parent=1 // pred_fallthru
      _
    // Predicated region
    $region130: #{tpu_custom_call.1} parent=1 // pred_check
      _
    $region131: #{tpu_custom_call.1} parent=1 // pred_check_branch
      %790 = sbr.rel (0) target = $region133
    $region132: #{tpu_custom_call.1} parent=1 // pred_region
      %791 = dma.done [#allocation13], 128
    $region133: #{tpu_custom_call.1} parent=1 // pred_fallthru
      _
    // Predicated region
    $region134: #{tpu_custom_call.1} parent=1 // pred_check
      _
    $region135: #{tpu_custom_call.1} parent=1 // pred_check_branch
      %793 = sbr.rel (0) target = $region137
    $region136: #{tpu_custom_call.1} parent=1 // pred_region
      %794 = dma.done [#allocation16], 128
    $region137: #{tpu_custom_call.1} parent=1 // pred_fallthru
      _
    // Predicated region
    $region138: #{tpu_custom_call.1} parent=1 // pred_check
      _
    $region139: #{tpu_custom_call.1} parent=1 // pred_check_branch
      %796 = sbr.rel (0) target = $region141
    $region140: #{tpu_custom_call.1} parent=1 // pred_region
      %797 = dma.done [#allocation16], 128
    $region141: #{tpu_custom_call.1} parent=1 // pred_fallthru
      _
    %798 = vsyncpa [#allocation3], 1
    %799 = vsyncpa [#allocation6], 1
    %800 = vsyncpa [#allocation4], 1
    %801 = vsyncpa [#allocation10], 1
    %802 = vsyncpa [#allocation13], 1
    %803 = vsyncpa [#allocation16], 1

</llo_original>
